<compile_context>
chip_gen: v7x
topology: tpu7x:2x2x1
jax: 0.10.0
libtpu: 0.0.40
codegen_flags: <defaults>
</compile_context>

<pallas_src>
import jax
import jax.numpy as jnp
import numpy as np
from jax import lax
from jax.experimental import pallas as pl
from jax.experimental.pallas import tpu as pltpu


_INV_SQRT2 = 0.7071067811865476


def _gelu_exact(x):
    # PyTorch nn.GELU() default ("none"): 0.5 * x * (1 + erf(x / sqrt(2)))
    return 0.5 * x * (1.0 + lax.erf(x * _INV_SQRT2))


# ---------------------------------------------------------------------------
# Router MLP (tiny; hoisted out of the Pallas kernel into plain JAX/XLA)
# ---------------------------------------------------------------------------
def _router_ratios(seq_embeds, params):
    wr, br, w1, b1, w2, b2, w3, b3 = params
    f32 = jnp.float32
    seq = seq_embeds.astype(f32)
    # embed_reduce(seq.transpose(1,2)).squeeze(-1):  pooled[b,e] = sum_s wr[s]*seq[b,s,e] + br
    pooled = jnp.einsum("bse,s->be", seq, wr.astype(f32)) + br.astype(f32)[0]
    h1 = _gelu_exact(pooled @ w1.astype(f32) + b1.astype(f32))
    h2 = _gelu_exact(h1 @ w2.astype(f32) + b2.astype(f32))
    logits = h2 @ w3.astype(f32) + b3.astype(f32)
    return jax.nn.softmax(logits, axis=-1)                      # (B, num_selector)


# ---------------------------------------------------------------------------
# Streaming mix kernel: out = rc * con + rd * dis   (ratios live in SMEM)
# ---------------------------------------------------------------------------
def _mix_kernel(ratios_ref, con_ref, dis_ref, out_ref):
    b = pl.program_id(0)
    rc = ratios_ref[b, 0]                      # f32 scalar (scalar path, no vld)
    rd = ratios_ref[b, 1]
    out_ref[...] = (rc * con_ref[...] + rd * dis_ref[...]).astype(out_ref.dtype)


def _round_up(x, m):
    return ((x + m - 1) // m) * m


def _target_tile_rows(stream_itemsize):
    """Rows (of 128 lanes) per block: ~1 MiB blocks, ~2 MiB on v7x."""
    try:
        kind = jax.devices()[0].device_kind.lower()
    except Exception:
        kind = ""
    target_bytes = (2 << 20) if "v7" in kind else (1 << 20)
    return max(512, target_bytes // (128 * stream_itemsize))


# ---------------------------------------------------------------------------
# Wrapper
# ---------------------------------------------------------------------------
def dart_router_mlp(con_h, dis_h, seq_embeds, params, *, stream_dtype=None):
    """Returns (hidden_states (B,C,H,W), routing_outcome dict) like the torch module."""
    wr, br, w1, b1, w2, b2, w3, b3 = params
    assert w3.shape[1] == 2, "DARTRouterMlp.forward mixes exactly two selectors"
    B, C, H, W = con_h.shape
    N = C * H * W

    ratios = _router_ratios(seq_embeds, params)                 # (B, 2) f32

    sdt = jnp.dtype(stream_dtype) if stream_dtype is not None else jnp.dtype(con_h.dtype)
    con_flat = con_h.reshape(B, N).astype(sdt)
    dis_flat = dis_h.reshape(B, N).astype(sdt)

    # --- tiling: pad to lane/sublane dense (rows_p, 128), large aligned tiles
    rows = -(-N // 128)
    tm_target = _target_tile_rows(sdt.itemsize)
    tm = _round_up(rows, 8) if rows <= tm_target else tm_target
    rows_p = _round_up(rows, tm)
    n_tiles = rows_p // tm
    NP = rows_p * 128
    if NP != N:
        con_flat = jnp.pad(con_flat, ((0, 0), (0, NP - N)))
        dis_flat = jnp.pad(dis_flat, ((0, 0), (0, NP - N)))
    con3 = con_flat.reshape(B, rows_p, 128)
    dis3 = dis_flat.reshape(B, rows_p, 128)

    tile_spec = pl.BlockSpec((None, tm, 128), lambda b, j, ratios_ref: (b, j, 0))

    cost = pl.CostEstimate(
        flops=3 * B * NP,
        transcendentals=0,
        bytes_accessed=3 * B * NP * sdt.itemsize + ratios.size * 4,
    )

    hidden3 = pl.pallas_call(
        _mix_kernel,
        grid_spec=pltpu.PrefetchScalarGridSpec(
            num_scalar_prefetch=1,                 # ratios -> SMEM before the grid
            grid=(B, n_tiles),
            in_specs=[tile_spec, tile_spec],
            out_specs=tile_spec,
        ),
        out_shape=jax.ShapeDtypeStruct((B, rows_p, 128), sdt),
        compiler_params=pltpu.CompilerParams(
            dimension_semantics=("parallel", "parallel"),
            vmem_limit_bytes=32 << 20,
        ),
        cost_estimate=cost,
    )(ratios, con3, dis3)

    hidden = hidden3.reshape(B, NP)[:, :N].reshape(B, C, H, W)

    # TODO(synk): torch module stores routing_outcome as mutable module state;
    # returned functionally here (the per-batch means equal the ratios).
    routing_outcome = {"continuous": ratios[:, 0], "discrete": ratios[:, 1]}
    return hidden, routing_outcome


# ---------------------------------------------------------------------------
# Pure-JAX reference (for correctness check only)
# ---------------------------------------------------------------------------
def reference(con_h, dis_h, seq_embeds, params):
    wr, br, w1, b1, w2, b2, w3, b3 = params
    reduced = jnp.einsum("bse,s->be", seq_embeds, wr) + br[0]
    h1 = _gelu_exact(reduced @ w1 + b1)
    h2 = _gelu_exact(h1 @ w2 + b2)
    ratios = jax.nn.softmax(h2 @ w3 + b3, axis=-1)
    cw = ratios[:, 0][:, None, None, None]
    dw = ratios[:, 1][:, None, None, None]
    return cw * con_h + dw * dis_h, ratios


def _linear_init(kw, kb, fan_in, fan_out):
    # PyTorch nn.Linear default: U(-1/sqrt(fan_in), 1/sqrt(fan_in)); stored (in, out)
    bound = 1.0 / np.sqrt(fan_in)
    Wm = jax.random.uniform(kw, (fan_in, fan_out), jnp.float32, -bound, bound)
    b = jax.random.uniform(kb, (fan_out,), jnp.float32, -bound, bound)
    return Wm, b


if __name__ == "__main__":
    # Small shapes consistent with the module signature.
    B, C, H, W = 2, 4, 16, 16          # (batch, Cvae, ph, pw)
    S, E, D, NSEL = 8, 32, 16, 2       # seq_len, embedding, seq_dim, num_selector

    key = jax.random.PRNGKey(0)
    ks = jax.random.split(key, 11)

    wr_full, br = _linear_init(ks[0], ks[1], S, 1)       # embed_reduce: Linear(seq_len, 1)
    wr = wr_full[:, 0]                                   # (S,)
    w1, b1 = _linear_init(ks[2], ks[3], E, D)            # Linear(embedding, seq_dim)
    w2, b2 = _linear_init(ks[4], ks[5], D, D)            # Linear(seq_dim, seq_dim)
    w3, b3 = _linear_init(ks[6], ks[7], D, NSEL)         # Linear(seq_dim, num_selector)
    params = (wr, br, w1, b1, w2, b2, w3, b3)

    con_h = jax.random.normal(ks[8], (B, C, H, W), jnp.float32)
    dis_h = jax.random.normal(ks[9], (B, C, H, W), jnp.float32)
    seq_embeds = jax.random.normal(ks[10], (B, S, E), jnp.float32)

    ref_hidden, ref_ratios = reference(con_h, dis_h, seq_embeds, params)

    # f32 streaming path (exact-tolerance check)
    hidden, routing = dart_router_mlp(con_h, dis_h, seq_embeds, params)
    hidden = jax.block_until_ready(hidden)
    routing = jax.tree_util.tree_map(jax.block_until_ready, routing)
    np.testing.assert_allclose(np.asarray(hidden), np.asarray(ref_hidden),
                               rtol=1e-4, atol=1e-5)
    np.testing.assert_allclose(np.asarray(routing["continuous"]),
                               np.asarray(ref_ratios[:, 0]), rtol=1e-4, atol=1e-5)
    np.testing.assert_allclose(np.asarray(routing["discrete"]),
                               np.asarray(ref_ratios[:, 1]), rtol=1e-4, atol=1e-5)

    # Non-128-aligned shape exercises the padding path.
    con_odd = jax.random.normal(ks[8], (B, 3, 10, 10), jnp.float32)
    dis_odd = jax.random.normal(ks[9], (B, 3, 10, 10), jnp.float32)
    ref_odd, _ = reference(con_odd, dis_odd, seq_embeds, params)
    hidden_odd, _ = dart_router_mlp(con_odd, dis_odd, seq_embeds, params)
    np.testing.assert_allclose(np.asarray(jax.block_until_ready(hidden_odd)),
                               np.asarray(ref_odd), rtol=1e-4, atol=1e-5)

    # bf16 streaming path (halves HBM traffic; loose tolerance)
    hidden_bf16, _ = dart_router_mlp(con_h, dis_h, seq_embeds, params,
                                     stream_dtype=jnp.bfloat16)
    np.testing.assert_allclose(
        np.asarray(jax.block_until_ready(hidden_bf16)).astype(np.float32),
        np.asarray(ref_hidden), rtol=2e-2, atol=2e-2)

    print("KERNEL_OK")
</pallas_src>

<mosaic_0001>
module attributes {stable_mosaic.version = 11 : i64} {
  func.func @_mix_kernel(%arg0: i32, %arg1: i32, %arg2: memref<2x2xf32, #tpu.memory_space<smem>>, %arg3: memref<1x8x128xf32, #tpu.memory_space<vmem>>, %arg4: memref<1x8x128xf32, #tpu.memory_space<vmem>>, %arg5: memref<1x8x128xf32, #tpu.memory_space<vmem>>) attributes {dimension_semantics = [#tpu.dimension_semantics<parallel>, #tpu.dimension_semantics<parallel>], iteration_bounds = array<i64: 2, 1>, scalar_prefetch = 1 : i64, scratch_operands = 0 : i64, tpu.core_type = #tpu.core_type<tc>, window_params = [{transform_indices = @transform_0, window_bounds = array<i64: 1, 8, 128>}, {transform_indices = @transform_1, window_bounds = array<i64: 1, 8, 128>}, {transform_indices = @transform_2, window_bounds = array<i64: 1, 8, 128>}]} {
    %0 = arith.index_cast %arg0 : i32 to index
    %c0 = arith.constant 0 : index
    %1 = memref.load %arg2[%0, %c0] : memref<2x2xf32, #tpu.memory_space<smem>>
    %2 = arith.index_cast %arg0 : i32 to index
    %c1 = arith.constant 1 : index
    %3 = memref.load %arg2[%2, %c1] : memref<2x2xf32, #tpu.memory_space<smem>>
    %c0_0 = arith.constant 0 : index
    %c0_1 = arith.constant 0 : index
    %c0_2 = arith.constant 0 : index
    %4 = vector.load %arg3[%c0_0, %c0_1, %c0_2] : memref<1x8x128xf32, #tpu.memory_space<vmem>>, vector<1x8x128xf32>
    %5 = vector.shape_cast %4 : vector<1x8x128xf32> to vector<8x128xf32>
    %6 = vector.broadcast %1 : f32 to vector<8x128xf32>
    %7 = arith.mulf %6, %5 : vector<8x128xf32>
    %c0_3 = arith.constant 0 : index
    %c0_4 = arith.constant 0 : index
    %c0_5 = arith.constant 0 : index
    %8 = vector.load %arg4[%c0_3, %c0_4, %c0_5] : memref<1x8x128xf32, #tpu.memory_space<vmem>>, vector<1x8x128xf32>
    %9 = vector.shape_cast %8 : vector<1x8x128xf32> to vector<8x128xf32>
    %10 = vector.broadcast %3 : f32 to vector<8x128xf32>
    %11 = arith.mulf %10, %9 : vector<8x128xf32>
    %12 = arith.addf %7, %11 : vector<8x128xf32>
    %c0_6 = arith.constant 0 : index
    %c0_7 = arith.constant 0 : index
    %c0_8 = arith.constant 0 : index
    %13 = vector.load %arg5[%c0_6, %c0_7, %c0_8] : memref<1x8x128xf32, #tpu.memory_space<vmem>>, vector<1x8x128xf32>
    %14 = vector.shape_cast %13 : vector<1x8x128xf32> to vector<8x128xf32>
    %15 = vector.shape_cast %12 : vector<8x128xf32> to vector<1x8x128xf32>
    tpu.vector_store %arg5[%c0_6, %c0_7, %c0_8], %15 {strides = array<i32>} : memref<1x8x128xf32, #tpu.memory_space<vmem>>, vector<1x8x128xf32>,
    return
  }
  func.func @transform_0(%arg0: i32, %arg1: i32, %arg2: memref<2x2xf32, #tpu.memory_space<smem>>) -> (i32, i32, i32) {
    %c0_i32 = arith.constant 0 : i32
    %c0_i32_0 = arith.constant 0 : i32
    return %arg0, %arg1, %c0_i32 : i32, i32, i32
  }
  func.func @transform_1(%arg0: i32, %arg1: i32, %arg2: memref<2x2xf32, #tpu.memory_space<smem>>) -> (i32, i32, i32) {
    %c0_i32 = arith.constant 0 : i32
    %c0_i32_0 = arith.constant 0 : i32
    return %arg0, %arg1, %c0_i32 : i32, i32, i32
  }
  func.func @transform_2(%arg0: i32, %arg1: i32, %arg2: memref<2x2xf32, #tpu.memory_space<smem>>) -> (i32, i32, i32) {
    %c0_i32 = arith.constant 0 : i32
    %c0_i32_0 = arith.constant 0 : i32
    return %arg0, %arg1, %c0_i32 : i32, i32, i32
  }
}

</mosaic_0001>

<llo_original>
// kernel: tpu_custom_call.1
$region0: #{tpu_custom_call.1}
  #allocation0 [shape = 'u32[]', space=smem, size = 0x4, offset = 0x4, fixed_abs, tag = 'smem constant byte address 0x4 - core index']
  #allocation1 [shape = 'u32[144,128]{1,0:T(1,128)}', space=vmem, size = 0x12000, scoped, tag = 'internal scratch']
  #allocation2 [shape = 's32[1]{0}', space=sflag, size = 0x4, scoped, tag = 'scoped memory for tpu_custom_call.1']
  #allocation3 [shape = 'u8[1024]{0}', space=smem, size = 0x400, scoped, tag = 'prefetched SMEM operand 0']
  %s0 = inlined_call_operand.hbm [shape: f32[2,2], index: 0, kind: input, shape index: {}]
  %s1 = inlined_call_operand.hbm [shape: f32[2,8,128], index: 1, kind: input, shape index: {}]
  %s2 = inlined_call_operand.hbm [shape: f32[2,8,128], index: 2, kind: input, shape index: {}]
  %s3 = inlined_call_operand.hbm [shape: f32[2,8,128], index: 3, kind: output, shape index: {}]
  %s4 = sld [smem:[#allocation0]]
  $region49: #{tpu_custom_call.1} parent=0
    _
  %s6 = ssub.s32 1, %s4
  %s7 = scalar_select 0, %s6, %s4
  %9 = dma.hbm_to_smem %s0, 32, [#allocation3], [#allocation2]
  %10 = dma.done [#allocation2], 32
  %11 = sfence
  $region1: #{tpu_custom_call.1} parent=0
    #allocation4 [shape = 'u8[8192]{0}', space=vmem, size = 0x2000, scoped, tag = 'input window, operand 1']
    #allocation5 [shape = 's32[2]{0}', space=sflag, size = 0x8, scoped, tag = 'scoped memory for tpu_custom_call.1']
    #allocation6 [shape = 's32[2]{0}', space=sflag, size = 0x8, scoped, tag = 'scoped memory for tpu_custom_call.1']
    #allocation7 [shape = 'u8[8192]{0}', space=vmem, size = 0x2000, scoped, tag = 'input window, operand 2']
    #allocation8 [shape = 's32[2]{0}', space=sflag, size = 0x8, scoped, tag = 'scoped memory for tpu_custom_call.1']
    #allocation9 [shape = 'u8[8192]{0}', space=vmem, size = 0x2000, scoped, tag = 'output window, operand 0']
    %12 = vsyncpa [#allocation5], 0
    %s13 = scalar_lea.sflag [#allocation5], 1
    %14 = vsyncpa %s13, 0
    %15 = vsyncpa [#allocation8], 0
    %s16 = scalar_lea.sflag [#allocation8], 1
    %17 = vsyncpa %s16, 0
    %18 = vsyncpa [#allocation6], 0
    %s19 = scalar_lea.sflag [#allocation6], 1
    %20 = vsyncpa %s19, 0
    loop: start=0, step=1, limit=4
    $region2: #{tpu_custom_call.1} parent=1 // loop_pre_header
      _
    $region3: #{tpu_custom_call.1} parent=1 // loop_header
      %s22 = sphi 0, %s26
      %p23 = scmp.ge.s32.totalorder %s22, 4
      %s29 = sphi 0, %s41
      %s30 = sphi 0, %s37
      %s31 = sphi 0, %s29
      %s32 = sphi 0, %s30
      %s33 = sphi 0, %s31
      %s34 = sphi 0, %s32
      %s46 = sphi 0, %s48
      %s49 = sphi 0, %s46
      %s50 = sphi 0, %s49
      %s66 = sphi 0, %s50
      %s74 = sphi 0, %s76
      %s77 = sphi 0, %s74
      %s78 = sphi 0, %s77
      %s94 = sphi 0, %s78
      %s102 = sphi 0, %s104
      %s105 = sphi 0, %s102
      %s106 = sphi 0, %s105
      %s122 = sphi 0, %s106
    $region4: #{tpu_custom_call.1} parent=1 // loop_header_branch
      %25 = sbr.rel (%p23) target = $region8
    $region5: #{tpu_custom_call.1} parent=1 // loop_body
      %s27 = ssub.s32 %s22, 1
      %s28 = ssub.s32 %s22, 2
      %s35 = sadd.s32 1, %s30
      %p36 = scmp.ge.s32.totalorder %s35, 1
      %s37 = scalar_select %p36, 0, %s35
      %s38 = sadd.s32 1, %s29
      %s39 = scalar_select %p36, %s38, %s29
      %p40 = scmp.ge.s32.totalorder %s39, 2
      %s41 = scalar_select %p40, 0, %s39
      %s42 = ssub.s32 %s29, %s41
      %s43 = ssub.s32 %s30, %s37
      %s44 = sor.u32 %s42, %s43
      %p45 = scmp.eq.s32.totalorder %s44, 0
      %s47 = sadd.s32 %s46, 1
      %s48 = scalar_select %p45, %s46, %s47
      %p51 = pneg %p45
      %p52 = scmp.eq.s32.totalorder %s22, 1
      %p53 = por %p51, %p52
      %p54 = scmp.ne.s32.totalorder %s46, %s49
      %p55 = scmp.eq.s32.totalorder %s22, 0
      %p56 = por %p54, %p55
      %p57 = scmp.ne.s32.totalorder %s46, %s49
      %p58 = scmp.eq.s32.totalorder %s27, 1
      %p59 = por %p57, %p58
      %p60 = scmp.ne.s32.totalorder %s49, %s50
      %p61 = scmp.eq.s32.totalorder %s27, 0
      %p62 = por %p60, %p61
      %p63 = scmp.ne.s32.totalorder %s49, %s50
      %p64 = scmp.eq.s32.totalorder %s28, 1
      %p65 = por %p63, %p64
      %p67 = scmp.ne.s32.totalorder %s50, %s66
      %p68 = scmp.eq.s32.totalorder %s28, 0
      %p69 = por %p67, %p68
      %s70 = ssub.s32 %s29, %s41
      %s71 = ssub.s32 %s30, %s37
      %s72 = sor.u32 %s70, %s71
      %p73 = scmp.eq.s32.totalorder %s72, 0
      %s75 = sadd.s32 %s74, 1
      %s76 = scalar_select %p73, %s74, %s75
      %p79 = pneg %p73
      %p80 = scmp.eq.s32.totalorder %s22, 1
      %p81 = por %p79, %p80
      %p82 = scmp.ne.s32.totalorder %s74, %s77
      %p83 = scmp.eq.s32.totalorder %s22, 0
      %p84 = por %p82, %p83
      %p85 = scmp.ne.s32.totalorder %s74, %s77
      %p86 = scmp.eq.s32.totalorder %s27, 1
      %p87 = por %p85, %p86
      %p88 = scmp.ne.s32.totalorder %s77, %s78
      %p89 = scmp.eq.s32.totalorder %s27, 0
      %p90 = por %p88, %p89
      %p91 = scmp.ne.s32.totalorder %s77, %s78
      %p92 = scmp.eq.s32.totalorder %s28, 1
      %p93 = por %p91, %p92
      %p95 = scmp.ne.s32.totalorder %s78, %s94
      %p96 = scmp.eq.s32.totalorder %s28, 0
      %p97 = por %p95, %p96
      %s98 = ssub.s32 %s29, %s41
      %s99 = ssub.s32 %s30, %s37
      %s100 = sor.u32 %s98, %s99
      %p101 = scmp.eq.s32.totalorder %s100, 0
      %s103 = sadd.s32 %s102, 1
      %s104 = scalar_select %p101, %s102, %s103
      %p107 = pneg %p101
      %p108 = scmp.eq.s32.totalorder %s22, 1
      %p109 = por %p107, %p108
      %p110 = scmp.ne.s32.totalorder %s102, %s105
      %p111 = scmp.eq.s32.totalorder %s22, 0
      %p112 = por %p110, %p111
      %p113 = scmp.ne.s32.totalorder %s102, %s105
      %p114 = scmp.eq.s32.totalorder %s27, 1
      %p115 = por %p113, %p114
      %p116 = scmp.ne.s32.totalorder %s105, %s106
      %p117 = scmp.eq.s32.totalorder %s27, 0
      %p118 = por %p116, %p117
      %p119 = scmp.ne.s32.totalorder %s105, %s106
      %p120 = scmp.eq.s32.totalorder %s28, 1
      %p121 = por %p119, %p120
      %p123 = scmp.ne.s32.totalorder %s106, %s122
      %p124 = scmp.eq.s32.totalorder %s28, 0
      %p125 = por %p123, %p124
      %p126 = scmp.le.s32.totalorder 1, %s22
      %p127 = scmp.lt.s32.totalorder %s22, 3
      %p128 = pnand %p126, %p127
      %p129 = pneg %p128
      // Predicated region
      $region9: #{tpu_custom_call.1} parent=5 // pred_check
        _
      $region10: #{tpu_custom_call.1} parent=5 // pred_check_branch
        %131 = sbr.rel (%p128) target = $region12
      $region11: #{tpu_custom_call.1} parent=5 // pred_region
        %s132 = ssub.s32 %s22, 1
      $region12: #{tpu_custom_call.1} parent=5 // pred_fallthru
        _
      %p133 = scmp.lt.s32.totalorder %s22, 2
      // Predicated region
      $region13: #{tpu_custom_call.1} parent=5 // pred_check
        %p134 = pneg %p133
      $region14: #{tpu_custom_call.1} parent=5 // pred_check_branch
        %136 = sbr.rel (%p134) target = $region16
      $region15: #{tpu_custom_call.1} parent=5 // pred_region
        // Predicated region
        $region17: #{tpu_custom_call.1} parent=15 // pred_check
          %p137 = pneg %p56
        $region18: #{tpu_custom_call.1} parent=15 // pred_check_branch
          %139 = sbr.rel (%p137) target = $region20
        $region19: #{tpu_custom_call.1} parent=15 // pred_region
          %s140 = sand.u32 %s46, 1
          %s141 = scalar_lea.sflag [#allocation5], %s140
          %s142 = sand.u32 %s46, 1
          %s143 = smul.addr %s142, 8
          %s144 = scalar_lea.vmem [#allocation4], %s143
          %s146 = ssub.s32 128, 128
          %147 = vsyncadd %s141, %s146
          %s148 = sadd.s32 %s30, %s29
          %s149 = smul.addr %s148, 128
          %s150 = scalar_lea.hbm %s1, %s149
          %s152 = sshll.u32 %s144, 4
          %s153 = int_to_ptr.vmem [resolvable:$true] %s152
          %155 = dma.hbm_to_vmem [thread:$0]  %s150, 128, %s153, %s141
        $region20: #{tpu_custom_call.1} parent=15 // pred_fallthru
          _
        // Predicated region
        $region21: #{tpu_custom_call.1} parent=15 // pred_check
          %p156 = pneg %p84
        $region22: #{tpu_custom_call.1} parent=15 // pred_check_branch
          %158 = sbr.rel (%p156) target = $region24
        $region23: #{tpu_custom_call.1} parent=15 // pred_region
          %s159 = sand.u32 %s74, 1
          %s160 = scalar_lea.sflag [#allocation8], %s159
          %s161 = sand.u32 %s74, 1
          %s162 = smul.addr %s161, 8
          %s163 = scalar_lea.vmem [#allocation7], %s162
          %s165 = ssub.s32 128, 128
          %166 = vsyncadd %s160, %s165
          %s167 = sadd.s32 %s30, %s29
          %s168 = smul.addr %s167, 128
          %s169 = scalar_lea.hbm %s2, %s168
          %s171 = sshll.u32 %s163, 4
          %s172 = int_to_ptr.vmem [resolvable:$true] %s171
          %174 = dma.hbm_to_vmem [thread:$0]  %s169, 128, %s172, %s160
        $region24: #{tpu_custom_call.1} parent=15 // pred_fallthru
          _
      $region16: #{tpu_custom_call.1} parent=5 // pred_fallthru
        _
      %p175 = scmp.le.s32.totalorder 1, %s22
      %p176 = scmp.lt.s32.totalorder %s22, 3
      %p177 = pnand %p175, %p176
      %p178 = pneg %p177
      // Predicated region
      $region25: #{tpu_custom_call.1} parent=5 // pred_check
        _
      $region26: #{tpu_custom_call.1} parent=5 // pred_check_branch
        %180 = sbr.rel (%p177) target = $region28
      $region27: #{tpu_custom_call.1} parent=5 // pred_region
        %s181 = ssub.s32 %s22, 1
        %s182 = sand.u32 %s49, 1
        %s183 = scalar_lea.sflag [#allocation5], %s182
        %s184 = sand.u32 %s49, 1
        %s185 = smul.addr %s184, 8
        %s186 = scalar_lea.vmem [#allocation4], %s185
        // Predicated region
        $region29: #{tpu_custom_call.1} parent=27 // pred_check
          %p187 = pneg %p62
        $region30: #{tpu_custom_call.1} parent=27 // pred_check_branch
          %189 = sbr.rel (%p187) target = $region32
        $region31: #{tpu_custom_call.1} parent=27 // pred_region
          %190 = dma.done %s183, 128
        $region32: #{tpu_custom_call.1} parent=27 // pred_fallthru
          _
        %s191 = sand.u32 %s77, 1
        %s192 = scalar_lea.sflag [#allocation8], %s191
        %s193 = sand.u32 %s77, 1
        %s194 = smul.addr %s193, 8
        %s195 = scalar_lea.vmem [#allocation7], %s194
        // Predicated region
        $region33: #{tpu_custom_call.1} parent=27 // pred_check
          %p196 = pneg %p90
        $region34: #{tpu_custom_call.1} parent=27 // pred_check_branch
          %198 = sbr.rel (%p196) target = $region36
        $region35: #{tpu_custom_call.1} parent=27 // pred_region
          %199 = dma.done %s192, 128
        $region36: #{tpu_custom_call.1} parent=27 // pred_fallthru
          _
        %s200 = sand.u32 %s49, 1
        %s201 = scalar_lea.sflag [#allocation5], %s200
        %s202 = sand.u32 %s49, 1
        %s203 = smul.addr %s202, 8
        %s204 = scalar_lea.vmem [#allocation4], %s203
        %p205 = pneg %p62
        %p206 = pneg %p59
        %s207 = sand.u32 %s77, 1
        %s208 = scalar_lea.sflag [#allocation8], %s207
        %s209 = sand.u32 %s77, 1
        %s210 = smul.addr %s209, 8
        %s211 = scalar_lea.vmem [#allocation7], %s210
        %p212 = pneg %p90
        %p213 = pneg %p87
        %p214 = pneg %p118
        %p215 = pneg %p115
        %s216 = sand.u32 %s105, 1
        %s217 = scalar_lea.sflag [#allocation6], %s216
        %s218 = sand.u32 %s105, 1
        %s219 = smul.addr %s218, 8
        %s220 = scalar_lea.vmem [#allocation9], %s219
        %s221 = smul.u32 %s31, 128
        %s222 = sld [smem:[#allocation3 + %s221]]
        %s223 = sadd.s32 %s221, 1
        %s224 = sld [smem:[#allocation3 + %s223]]
        %v225 = vld [vmem:[%s186] sm:$0xff]
        %v226 = vstv %s222
        %v227 = vmul.f32 %v226, %v225
        %v228 = vld [vmem:[%s195] sm:$0xff]
        %v229 = vstv %s224
        %v230 = vmul.f32 %v229, %v228
        %v231 = vadd.f32 %v227, %v230
        %232 = vst [vmem:[%s220] sm:$0xff] %v231
        %s233 = sand.u32 %s105, 1
        %s234 = scalar_lea.sflag [#allocation6], %s233
        %s235 = sand.u32 %s105, 1
        %s236 = smul.addr %s235, 8
        %s237 = scalar_lea.vmem [#allocation9], %s236
        // Predicated region
        $region37: #{tpu_custom_call.1} parent=27 // pred_check
          %p238 = pneg %p115
        $region38: #{tpu_custom_call.1} parent=27 // pred_check_branch
          %240 = sbr.rel (%p238) target = $region40
        $region39: #{tpu_custom_call.1} parent=27 // pred_region
          %s242 = ssub.s32 128, 128
          %243 = vsyncadd %s234, %s242
          %s244 = sadd.s32 %s32, %s31
          %s245 = smul.addr %s244, 128
          %s246 = scalar_lea.hbm %s3, %s245
          %s248 = sshll.u32 %s237, 4
          %s249 = int_to_ptr.vmem [resolvable:$true] %s248
          %251 = dma.vmem_to_hbm [thread:$0]  %s249, 128, %s246, %s234
        $region40: #{tpu_custom_call.1} parent=27 // pred_fallthru
          _
      $region28: #{tpu_custom_call.1} parent=5 // pred_fallthru
        _
      %p252 = scmp.le.s32.totalorder 2, %s22
      // Predicated region
      $region41: #{tpu_custom_call.1} parent=5 // pred_check
        %p253 = pneg %p252
      $region42: #{tpu_custom_call.1} parent=5 // pred_check_branch
        %255 = sbr.rel (%p253) target = $region44
      $region43: #{tpu_custom_call.1} parent=5 // pred_region
        %s256 = ssub.s32 %s22, 2
        // Predicated region
        $region45: #{tpu_custom_call.1} parent=43 // pred_check
          %p257 = pneg %p121
        $region46: #{tpu_custom_call.1} parent=43 // pred_check_branch
          %259 = sbr.rel (%p257) target = $region48
        $region47: #{tpu_custom_call.1} parent=43 // pred_region
          %s260 = sand.u32 %s106, 1
          %s261 = scalar_lea.sflag [#allocation6], %s260
          %s262 = sand.u32 %s106, 1
          %s263 = smul.addr %s262, 8
          %s264 = scalar_lea.vmem [#allocation9], %s263
          %265 = dma.done %s261, 128
        $region48: #{tpu_custom_call.1} parent=43 // pred_fallthru
          _
      $region44: #{tpu_custom_call.1} parent=5 // pred_fallthru
        _
    $region6: #{tpu_custom_call.1} parent=1 // loop_footer
      %s26 = sadd.s32 1, %s22
    $region7: #{tpu_custom_call.1} parent=1 // loop_footer_branch
      %21 = sbr.rel target = $region3
    $region8: #{tpu_custom_call.1} parent=1 // loop_exit
      _
    %266 = vsyncpa [#allocation5], 1
    %s267 = scalar_lea.sflag [#allocation5], 1
    %268 = vsyncpa %s267, 1
    %269 = vsyncpa [#allocation8], 1
    %s270 = scalar_lea.sflag [#allocation8], 1
    %271 = vsyncpa %s270, 1
    %272 = vsyncpa [#allocation6], 1
    %s273 = scalar_lea.sflag [#allocation6], 1
    %274 = vsyncpa %s273, 1

</llo_original>
